<compile_context>
chip_gen: v5e
topology: v5e:2x2
jax: 0.10.0
libtpu: 0.0.40
codegen_flags: <defaults>
</compile_context>

<pallas_src>
import functools

import jax
import jax.numpy as jnp
from jax import lax
from jax.experimental import pallas as pl
from jax.experimental.pallas import tpu as pltpu

BN_EPS = 1e-5


def _round_up(a, b):
    return (a + b - 1) // b * b


def _initial_block_kernel(t_ref, w_ref, bn_ref, flags_ref, o_ref, *, c_main):
    c_out, tm = o_ref.shape
    c_in = t_ref.shape[1]

    t = t_ref[...]          # (9, c_in, tm)   compute dtype (bf16 or f32)
    wk = w_ref[...]         # (9, c_main, c_in) compute dtype, BN scale pre-folded

    # ---- main branch: 3x3 / stride-2 conv as 9 accumulated per-tap matmuls (MXU),
    #      f32 accumulation. MXU is never the bottleneck here, HBM is.
    acc = jnp.zeros((c_main, tm), dtype=jnp.float32)
    for k in range(9):
        acc = acc + jnp.dot(wk[k], t[k], preferred_element_type=jnp.float32)

    # ---- ext branch: 3x3 / stride-2 maxpool.
    # Max over the leading tap axis = 8 plain VPU vmax ops across vregs (no
    # lane-offset slicing). The shared taps array is zero-padded (conv needs 0),
    # so taps that fall on spatial padding are pushed to -BIG using precomputed
    # per-pixel border flags (bit0=top, bit1=bottom, bit2=left, bit3=right).
    flags = flags_ref[...]                       # (1, tm) int32
    top = (flags & 1) != 0
    bottom = (flags & 2) != 0
    left = (flags & 4) != 0
    right = (flags & 8) != 0
    row_bad = (top, None, bottom)                # ky = 0, 1, 2
    col_bad = (left, None, right)                # kx = 0, 1, 2

    tf = t.astype(jnp.float32)                   # pool max in f32 (v5e-friendly)
    neg = jnp.float32(-1e30)
    pool = None
    for k in range(9):
        ky, kx = k // 3, k % 3
        v = tf[k]                                # (c_in, tm)
        rb, cb = row_bad[ky], col_bad[kx]
        bad = rb if cb is None else (cb if rb is None else (rb | cb))
        if bad is not None:
            v = jnp.where(bad, neg, v)
        pool = v if pool is None else jnp.maximum(pool, v)

    # ---- folded BatchNorm (inference mode, running stats) + ReLU.
    # Two independent lane-dense stores instead of an in-kernel channel concat.
    bnv = bn_ref[...]                            # (c_out, 2) f32: [scale, shift]
    scale = bnv[:, 0:1]
    shift = bnv[:, 1:2]
    conv_y = acc + shift[:c_main]                # scale already folded into wk
    pool_y = pool * scale[c_main:] + shift[c_main:]
    o_ref[0:c_main, :] = jnp.maximum(conv_y, 0.0).astype(o_ref.dtype)
    o_ref[c_main:c_out, :] = jnp.maximum(pool_y, 0.0).astype(o_ref.dtype)


def initial_block_forward(x_nchw, conv_w, gamma, beta, running_mean, running_var,
                          *, tm_max=1024, compute_dtype=jnp.bfloat16):
    """InitialBlock forward. x_nchw: [N, Cin, H, W]; returns [N, Cout, Ho, Wo]."""
    n, c_in, h, w = x_nchw.shape
    c_main = conv_w.shape[0]                     # = out_channels - in_channels
    c_out = c_main + c_in
    ho = (h + 2 - 3) // 2 + 1
    wo = (w + 2 - 3) // 2 + 1
    m = n * ho * wo

    # --- fold BN (inference) into per-channel scale/shift; fold scale into conv w.
    scale = gamma * lax.rsqrt(running_var + BN_EPS)
    shift = beta - running_mean * scale
    bn = jnp.stack([scale, shift], axis=1).astype(jnp.float32)        # (c_out, 2)

    w_taps = jnp.transpose(conv_w, (2, 3, 0, 1)).reshape(9, c_main, c_in)
    w_taps = (w_taps * scale[:c_main][None, :, None]).astype(compute_dtype)

    # --- single tap-major gather of the 9 stride-2 window taps (zero-padded).
    x = jnp.transpose(x_nchw, (0, 2, 3, 1))                           # NHWC
    xp = jnp.pad(x, ((0, 0), (1, 1), (1, 1), (0, 0)))
    taps = jnp.stack([xp[:, ky:ky + 2 * ho:2, kx:kx + 2 * wo:2, :]
                      for ky in range(3) for kx in range(3)], axis=0)  # (9,n,ho,wo,cin)
    taps = jnp.transpose(taps, (0, 4, 1, 2, 3)).reshape(9, c_in, m)
    taps = taps.astype(compute_dtype)

    # --- per-output-pixel border flags for the maxpool's -inf padding.
    idx = jnp.arange(m, dtype=jnp.int32)
    oh_idx = (idx // wo) % ho
    ow_idx = idx % wo
    flags = ((oh_idx == 0).astype(jnp.int32) * 1            # ky=0 hits top pad
             + (2 * oh_idx + 2 > h).astype(jnp.int32) * 2   # ky=2 hits bottom pad
             + (ow_idx == 0).astype(jnp.int32) * 4          # kx=0 hits left pad
             + (2 * ow_idx + 2 > w).astype(jnp.int32) * 8)  # kx=2 hits right pad

    # --- pick tm for performance (multiple of 128, up to tm_max); pad rows
    #     instead of asserting divisibility. Extra padded rows compute garbage
    #     that is sliced off below.
    tm = min(tm_max, _round_up(m, 128))
    mp = _round_up(m, tm)
    if mp > m:
        taps = jnp.pad(taps, ((0, 0), (0, 0), (0, mp - m)))
        flags = jnp.pad(flags, (0, mp - m))
    flags = flags.reshape(1, mp)

    grid = (mp // tm,)
    kernel = functools.partial(_initial_block_kernel, c_main=c_main)

    out_t = pl.pallas_call(
        kernel,
        out_shape=jax.ShapeDtypeStruct((c_out, mp), x_nchw.dtype),
        grid=grid,
        in_specs=[
            pl.BlockSpec((9, c_in, tm), lambda i: (0, 0, i)),      # taps
            pl.BlockSpec((9, c_main, c_in), lambda i: (0, 0, 0)),  # conv weights (const)
            pl.BlockSpec((c_out, 2), lambda i: (0, 0)),            # BN scale/shift (const)
            pl.BlockSpec((1, tm), lambda i: (0, i)),               # border flags
        ],
        out_specs=pl.BlockSpec((c_out, tm), lambda i: (0, i)),     # transposed, lane-dense
        compiler_params=pltpu.CompilerParams(
            dimension_semantics=("parallel",)),
    )(taps, w_taps, bn, flags)

    out = out_t[:, :m].reshape(c_out, n, ho, wo)
    return jnp.transpose(out, (1, 0, 2, 3))                        # back to NCHW


def reference_forward(x_nchw, conv_w, gamma, beta, running_mean, running_var):
    """Pure-JAX reference with identical semantics (BN in inference mode)."""
    x = jnp.transpose(x_nchw, (0, 2, 3, 1))
    w_hwio = jnp.transpose(conv_w, (2, 3, 1, 0))
    conv = lax.conv_general_dilated(
        x, w_hwio, window_strides=(2, 2), padding=((1, 1), (1, 1)),
        dimension_numbers=('NHWC', 'HWIO', 'NHWC'),
        precision=lax.Precision.HIGHEST)
    pool = lax.reduce_window(
        x, -jnp.inf, lax.max, (1, 3, 3, 1), (1, 2, 2, 1),
        ((0, 0), (1, 1), (1, 1), (0, 0)))
    out = jnp.concatenate([conv, pool], axis=-1)
    out = (out - running_mean) * lax.rsqrt(running_var + BN_EPS) * gamma + beta
    out = jnp.maximum(out, 0.0)
    return jnp.transpose(out, (0, 3, 1, 2))


if __name__ == "__main__":
    # Module config: InitialBlock(in_channels=4, out_channels=16, bias=False, relu=True)
    N, C_IN, H, W = 2, 4, 16, 16
    C_OUT = 16
    C_MAIN = C_OUT - C_IN

    key = jax.random.PRNGKey(0)
    k_x, k_w, k_g, k_b, k_m, k_v = jax.random.split(key, 6)

    x = jax.random.normal(k_x, (N, C_IN, H, W), dtype=jnp.float32)
    conv_w = 0.1 * jax.random.normal(k_w, (C_MAIN, C_IN, 3, 3), dtype=jnp.float32)
    gamma = 1.0 + 0.1 * jax.random.normal(k_g, (C_OUT,), dtype=jnp.float32)
    beta = 0.1 * jax.random.normal(k_b, (C_OUT,), dtype=jnp.float32)
    running_mean = 0.05 * jax.random.normal(k_m, (C_OUT,), dtype=jnp.float32)
    running_var = 0.5 + jnp.abs(jax.random.normal(k_v, (C_OUT,), dtype=jnp.float32))

    # NOTE: BatchNorm is implemented in inference (eval) mode using explicit
    # running stats; train-mode batch statistics are not computed here.
    ref = reference_forward(x, conv_w, gamma, beta, running_mean, running_var)

    # f32 compute path: near-exact check of the algorithm.
    out_f32 = initial_block_forward(x, conv_w, gamma, beta, running_mean,
                                    running_var, compute_dtype=jnp.float32)
    out_f32 = jax.block_until_ready(out_f32)
    assert out_f32.shape == (N, C_OUT, H // 2, W // 2), out_f32.shape
    assert jnp.allclose(out_f32, ref, atol=5e-3, rtol=5e-3), \
        float(jnp.max(jnp.abs(out_f32 - ref)))

    # bf16 streamed activations/weights (default perf mode; f32 accumulation).
    out_bf16 = initial_block_forward(x, conv_w, gamma, beta, running_mean,
                                     running_var)
    out_bf16 = jax.block_until_ready(out_bf16)
    assert out_bf16.shape == (N, C_OUT, H // 2, W // 2), out_bf16.shape
    assert jnp.allclose(out_bf16, ref, atol=3e-2, rtol=3e-2), \
        float(jnp.max(jnp.abs(out_bf16 - ref)))

    print("KERNEL_OK")
</pallas_src>

<mosaic_0001>
module attributes {stable_mosaic.version = 11 : i64} {
  func.func @_initial_block_kernel(%arg0: i32, %arg1: memref<9x4x128xf32, #tpu.memory_space<vmem>>, %arg2: memref<9x12x4xf32, #tpu.memory_space<vmem>>, %arg3: memref<16x2xf32, #tpu.memory_space<vmem>>, %arg4: memref<1x128xi32, #tpu.memory_space<vmem>>, %arg5: memref<16x128xf32, #tpu.memory_space<vmem>>) attributes {dimension_semantics = [#tpu.dimension_semantics<parallel>], iteration_bounds = array<i64: 1>, scalar_prefetch = 0 : i64, scratch_operands = 0 : i64, tpu.core_type = #tpu.core_type<tc>, window_params = [{transform_indices = @transform_0, window_bounds = array<i64: 9, 4, 128>}, {pipeline_mode = #tpu.pipeline_mode<synchronous>, transform_indices = @transform_1, window_bounds = array<i64: 9, 12, 4>}, {pipeline_mode = #tpu.pipeline_mode<synchronous>, transform_indices = @transform_2, window_bounds = array<i64: 16, 2>}, {transform_indices = @transform_3, window_bounds = array<i64: 1, 128>}, {transform_indices = @transform_4, window_bounds = array<i64: 16, 128>}]} {
    %c0 = arith.constant 0 : index
    %c0_0 = arith.constant 0 : index
    %c0_1 = arith.constant 0 : index
    %0 = vector.load %arg1[%c0, %c0_0, %c0_1] : memref<9x4x128xf32, #tpu.memory_space<vmem>>, vector<9x4x128xf32>
    %c0_2 = arith.constant 0 : index
    %c0_3 = arith.constant 0 : index
    %c0_4 = arith.constant 0 : index
    %1 = vector.load %arg2[%c0_2, %c0_3, %c0_4] : memref<9x12x4xf32, #tpu.memory_space<vmem>>, vector<9x12x4xf32>
    %cst = arith.constant 0.000000e+00 : f32
    %2 = vector.broadcast %cst : f32 to vector<12x128xf32>
    %3 = vector.extract_strided_slice %1 {offsets = [0, 0, 0], sizes = [1, 12, 4], strides = [1, 1, 1]} : vector<9x12x4xf32> to vector<1x12x4xf32>
    %4 = vector.shape_cast %3 : vector<1x12x4xf32> to vector<12x4xf32>
    %5 = vector.extract_strided_slice %0 {offsets = [0, 0, 0], sizes = [1, 4, 128], strides = [1, 1, 1]} : vector<9x4x128xf32> to vector<1x4x128xf32>
    %6 = vector.shape_cast %5 : vector<1x4x128xf32> to vector<4x128xf32>
    %cst_5 = arith.constant dense<0.000000e+00> : vector<12x128xf32>
    %7 = tpu.matmul %4, %6, %cst_5 {dimension_numbers = #tpu.dot_dimension_numbers<[1], [0], [0], [1], [0, 0, 1, 1], [], []>} : vector<12x4xf32>, vector<4x128xf32>, vector<12x128xf32> -> vector<12x128xf32>
    %8 = arith.addf %2, %7 : vector<12x128xf32>
    %9 = vector.extract_strided_slice %1 {offsets = [1, 0, 0], sizes = [1, 12, 4], strides = [1, 1, 1]} : vector<9x12x4xf32> to vector<1x12x4xf32>
    %10 = vector.shape_cast %9 : vector<1x12x4xf32> to vector<12x4xf32>
    %11 = vector.extract_strided_slice %0 {offsets = [1, 0, 0], sizes = [1, 4, 128], strides = [1, 1, 1]} : vector<9x4x128xf32> to vector<1x4x128xf32>
    %12 = vector.shape_cast %11 : vector<1x4x128xf32> to vector<4x128xf32>
    %cst_6 = arith.constant dense<0.000000e+00> : vector<12x128xf32>
    %13 = tpu.matmul %10, %12, %cst_6 {dimension_numbers = #tpu.dot_dimension_numbers<[1], [0], [0], [1], [0, 0, 1, 1], [], []>} : vector<12x4xf32>, vector<4x128xf32>, vector<12x128xf32> -> vector<12x128xf32>
    %14 = arith.addf %8, %13 : vector<12x128xf32>
    %15 = vector.extract_strided_slice %1 {offsets = [2, 0, 0], sizes = [1, 12, 4], strides = [1, 1, 1]} : vector<9x12x4xf32> to vector<1x12x4xf32>
    %16 = vector.shape_cast %15 : vector<1x12x4xf32> to vector<12x4xf32>
    %17 = vector.extract_strided_slice %0 {offsets = [2, 0, 0], sizes = [1, 4, 128], strides = [1, 1, 1]} : vector<9x4x128xf32> to vector<1x4x128xf32>
    %18 = vector.shape_cast %17 : vector<1x4x128xf32> to vector<4x128xf32>
    %cst_7 = arith.constant dense<0.000000e+00> : vector<12x128xf32>
    %19 = tpu.matmul %16, %18, %cst_7 {dimension_numbers = #tpu.dot_dimension_numbers<[1], [0], [0], [1], [0, 0, 1, 1], [], []>} : vector<12x4xf32>, vector<4x128xf32>, vector<12x128xf32> -> vector<12x128xf32>
    %20 = arith.addf %14, %19 : vector<12x128xf32>
    %21 = vector.extract_strided_slice %1 {offsets = [3, 0, 0], sizes = [1, 12, 4], strides = [1, 1, 1]} : vector<9x12x4xf32> to vector<1x12x4xf32>
    %22 = vector.shape_cast %21 : vector<1x12x4xf32> to vector<12x4xf32>
    %23 = vector.extract_strided_slice %0 {offsets = [3, 0, 0], sizes = [1, 4, 128], strides = [1, 1, 1]} : vector<9x4x128xf32> to vector<1x4x128xf32>
    %24 = vector.shape_cast %23 : vector<1x4x128xf32> to vector<4x128xf32>
    %cst_8 = arith.constant dense<0.000000e+00> : vector<12x128xf32>
    %25 = tpu.matmul %22, %24, %cst_8 {dimension_numbers = #tpu.dot_dimension_numbers<[1], [0], [0], [1], [0, 0, 1, 1], [], []>} : vector<12x4xf32>, vector<4x128xf32>, vector<12x128xf32> -> vector<12x128xf32>
    %26 = arith.addf %20, %25 : vector<12x128xf32>
    %27 = vector.extract_strided_slice %1 {offsets = [4, 0, 0], sizes = [1, 12, 4], strides = [1, 1, 1]} : vector<9x12x4xf32> to vector<1x12x4xf32>
    %28 = vector.shape_cast %27 : vector<1x12x4xf32> to vector<12x4xf32>
    %29 = vector.extract_strided_slice %0 {offsets = [4, 0, 0], sizes = [1, 4, 128], strides = [1, 1, 1]} : vector<9x4x128xf32> to vector<1x4x128xf32>
    %30 = vector.shape_cast %29 : vector<1x4x128xf32> to vector<4x128xf32>
    %cst_9 = arith.constant dense<0.000000e+00> : vector<12x128xf32>
    %31 = tpu.matmul %28, %30, %cst_9 {dimension_numbers = #tpu.dot_dimension_numbers<[1], [0], [0], [1], [0, 0, 1, 1], [], []>} : vector<12x4xf32>, vector<4x128xf32>, vector<12x128xf32> -> vector<12x128xf32>
    %32 = arith.addf %26, %31 : vector<12x128xf32>
    %33 = vector.extract_strided_slice %1 {offsets = [5, 0, 0], sizes = [1, 12, 4], strides = [1, 1, 1]} : vector<9x12x4xf32> to vector<1x12x4xf32>
    %34 = vector.shape_cast %33 : vector<1x12x4xf32> to vector<12x4xf32>
    %35 = vector.extract_strided_slice %0 {offsets = [5, 0, 0], sizes = [1, 4, 128], strides = [1, 1, 1]} : vector<9x4x128xf32> to vector<1x4x128xf32>
    %36 = vector.shape_cast %35 : vector<1x4x128xf32> to vector<4x128xf32>
    %cst_10 = arith.constant dense<0.000000e+00> : vector<12x128xf32>
    %37 = tpu.matmul %34, %36, %cst_10 {dimension_numbers = #tpu.dot_dimension_numbers<[1], [0], [0], [1], [0, 0, 1, 1], [], []>} : vector<12x4xf32>, vector<4x128xf32>, vector<12x128xf32> -> vector<12x128xf32>
    %38 = arith.addf %32, %37 : vector<12x128xf32>
    %39 = vector.extract_strided_slice %1 {offsets = [6, 0, 0], sizes = [1, 12, 4], strides = [1, 1, 1]} : vector<9x12x4xf32> to vector<1x12x4xf32>
    %40 = vector.shape_cast %39 : vector<1x12x4xf32> to vector<12x4xf32>
    %41 = vector.extract_strided_slice %0 {offsets = [6, 0, 0], sizes = [1, 4, 128], strides = [1, 1, 1]} : vector<9x4x128xf32> to vector<1x4x128xf32>
    %42 = vector.shape_cast %41 : vector<1x4x128xf32> to vector<4x128xf32>
    %cst_11 = arith.constant dense<0.000000e+00> : vector<12x128xf32>
    %43 = tpu.matmul %40, %42, %cst_11 {dimension_numbers = #tpu.dot_dimension_numbers<[1], [0], [0], [1], [0, 0, 1, 1], [], []>} : vector<12x4xf32>, vector<4x128xf32>, vector<12x128xf32> -> vector<12x128xf32>
    %44 = arith.addf %38, %43 : vector<12x128xf32>
    %45 = vector.extract_strided_slice %1 {offsets = [7, 0, 0], sizes = [1, 12, 4], strides = [1, 1, 1]} : vector<9x12x4xf32> to vector<1x12x4xf32>
    %46 = vector.shape_cast %45 : vector<1x12x4xf32> to vector<12x4xf32>
    %47 = vector.extract_strided_slice %0 {offsets = [7, 0, 0], sizes = [1, 4, 128], strides = [1, 1, 1]} : vector<9x4x128xf32> to vector<1x4x128xf32>
    %48 = vector.shape_cast %47 : vector<1x4x128xf32> to vector<4x128xf32>
    %cst_12 = arith.constant dense<0.000000e+00> : vector<12x128xf32>
    %49 = tpu.matmul %46, %48, %cst_12 {dimension_numbers = #tpu.dot_dimension_numbers<[1], [0], [0], [1], [0, 0, 1, 1], [], []>} : vector<12x4xf32>, vector<4x128xf32>, vector<12x128xf32> -> vector<12x128xf32>
    %50 = arith.addf %44, %49 : vector<12x128xf32>
    %51 = vector.extract_strided_slice %1 {offsets = [8, 0, 0], sizes = [1, 12, 4], strides = [1, 1, 1]} : vector<9x12x4xf32> to vector<1x12x4xf32>
    %52 = vector.shape_cast %51 : vector<1x12x4xf32> to vector<12x4xf32>
    %53 = vector.extract_strided_slice %0 {offsets = [8, 0, 0], sizes = [1, 4, 128], strides = [1, 1, 1]} : vector<9x4x128xf32> to vector<1x4x128xf32>
    %54 = vector.shape_cast %53 : vector<1x4x128xf32> to vector<4x128xf32>
    %cst_13 = arith.constant dense<0.000000e+00> : vector<12x128xf32>
    %55 = tpu.matmul %52, %54, %cst_13 {dimension_numbers = #tpu.dot_dimension_numbers<[1], [0], [0], [1], [0, 0, 1, 1], [], []>} : vector<12x4xf32>, vector<4x128xf32>, vector<12x128xf32> -> vector<12x128xf32>
    %56 = arith.addf %50, %55 : vector<12x128xf32>
    %c0_14 = arith.constant 0 : index
    %c0_15 = arith.constant 0 : index
    %57 = vector.load %arg4[%c0_14, %c0_15] : memref<1x128xi32, #tpu.memory_space<vmem>>, vector<1x128xi32>
    %c1_i32 = arith.constant 1 : i32
    %58 = vector.broadcast %c1_i32 : i32 to vector<1x128xi32>
    %59 = arith.andi %57, %58 : vector<1x128xi32>
    %c0_i32 = arith.constant 0 : i32
    %60 = vector.broadcast %c0_i32 : i32 to vector<1x128xi32>
    %61 = arith.cmpi ne, %59, %60 : vector<1x128xi32>
    %c2_i32 = arith.constant 2 : i32
    %62 = vector.broadcast %c2_i32 : i32 to vector<1x128xi32>
    %63 = arith.andi %57, %62 : vector<1x128xi32>
    %c0_i32_16 = arith.constant 0 : i32
    %64 = vector.broadcast %c0_i32_16 : i32 to vector<1x128xi32>
    %65 = arith.cmpi ne, %63, %64 : vector<1x128xi32>
    %c4_i32 = arith.constant 4 : i32
    %66 = vector.broadcast %c4_i32 : i32 to vector<1x128xi32>
    %67 = arith.andi %57, %66 : vector<1x128xi32>
    %c0_i32_17 = arith.constant 0 : i32
    %68 = vector.broadcast %c0_i32_17 : i32 to vector<1x128xi32>
    %69 = arith.cmpi ne, %67, %68 : vector<1x128xi32>
    %c8_i32 = arith.constant 8 : i32
    %70 = vector.broadcast %c8_i32 : i32 to vector<1x128xi32>
    %71 = arith.andi %57, %70 : vector<1x128xi32>
    %c0_i32_18 = arith.constant 0 : i32
    %72 = vector.broadcast %c0_i32_18 : i32 to vector<1x128xi32>
    %73 = arith.cmpi ne, %71, %72 : vector<1x128xi32>
    %74 = vector.extract_strided_slice %0 {offsets = [0, 0, 0], sizes = [1, 4, 128], strides = [1, 1, 1]} : vector<9x4x128xf32> to vector<1x4x128xf32>
    %75 = vector.shape_cast %74 : vector<1x4x128xf32> to vector<4x128xf32>
    %76 = arith.ori %61, %69 : vector<1x128xi1>
    %cst_19 = arith.constant -1.000000e+30 : f32
    %77 = vector.shape_cast %76 : vector<1x128xi1> to vector<1x128xi1>
    %78 = vector.broadcast %77 : vector<1x128xi1> to vector<4x128xi1>
    %79 = vector.broadcast %cst_19 : f32 to vector<4x128xf32>
    %80 = arith.select %78, %79, %75 : vector<4x128xi1>, vector<4x128xf32>
    %81 = vector.extract_strided_slice %0 {offsets = [1, 0, 0], sizes = [1, 4, 128], strides = [1, 1, 1]} : vector<9x4x128xf32> to vector<1x4x128xf32>
    %82 = vector.shape_cast %81 : vector<1x4x128xf32> to vector<4x128xf32>
    %cst_20 = arith.constant -1.000000e+30 : f32
    %83 = vector.shape_cast %61 : vector<1x128xi1> to vector<1x128xi1>
    %84 = vector.broadcast %83 : vector<1x128xi1> to vector<4x128xi1>
    %85 = vector.broadcast %cst_20 : f32 to vector<4x128xf32>
    %86 = arith.select %84, %85, %82 : vector<4x128xi1>, vector<4x128xf32>
    %87 = arith.maximumf %80, %86 : vector<4x128xf32>
    %88 = vector.extract_strided_slice %0 {offsets = [2, 0, 0], sizes = [1, 4, 128], strides = [1, 1, 1]} : vector<9x4x128xf32> to vector<1x4x128xf32>
    %89 = vector.shape_cast %88 : vector<1x4x128xf32> to vector<4x128xf32>
    %90 = arith.ori %61, %73 : vector<1x128xi1>
    %cst_21 = arith.constant -1.000000e+30 : f32
    %91 = vector.shape_cast %90 : vector<1x128xi1> to vector<1x128xi1>
    %92 = vector.broadcast %91 : vector<1x128xi1> to vector<4x128xi1>
    %93 = vector.broadcast %cst_21 : f32 to vector<4x128xf32>
    %94 = arith.select %92, %93, %89 : vector<4x128xi1>, vector<4x128xf32>
    %95 = arith.maximumf %87, %94 : vector<4x128xf32>
    %96 = vector.extract_strided_slice %0 {offsets = [3, 0, 0], sizes = [1, 4, 128], strides = [1, 1, 1]} : vector<9x4x128xf32> to vector<1x4x128xf32>
    %97 = vector.shape_cast %96 : vector<1x4x128xf32> to vector<4x128xf32>
    %cst_22 = arith.constant -1.000000e+30 : f32
    %98 = vector.shape_cast %69 : vector<1x128xi1> to vector<1x128xi1>
    %99 = vector.broadcast %98 : vector<1x128xi1> to vector<4x128xi1>
    %100 = vector.broadcast %cst_22 : f32 to vector<4x128xf32>
    %101 = arith.select %99, %100, %97 : vector<4x128xi1>, vector<4x128xf32>
    %102 = arith.maximumf %95, %101 : vector<4x128xf32>
    %103 = vector.extract_strided_slice %0 {offsets = [4, 0, 0], sizes = [1, 4, 128], strides = [1, 1, 1]} : vector<9x4x128xf32> to vector<1x4x128xf32>
    %104 = vector.shape_cast %103 : vector<1x4x128xf32> to vector<4x128xf32>
    %105 = arith.maximumf %102, %104 : vector<4x128xf32>
    %106 = vector.extract_strided_slice %0 {offsets = [5, 0, 0], sizes = [1, 4, 128], strides = [1, 1, 1]} : vector<9x4x128xf32> to vector<1x4x128xf32>
    %107 = vector.shape_cast %106 : vector<1x4x128xf32> to vector<4x128xf32>
    %cst_23 = arith.constant -1.000000e+30 : f32
    %108 = vector.shape_cast %73 : vector<1x128xi1> to vector<1x128xi1>
    %109 = vector.broadcast %108 : vector<1x128xi1> to vector<4x128xi1>
    %110 = vector.broadcast %cst_23 : f32 to vector<4x128xf32>
    %111 = arith.select %109, %110, %107 : vector<4x128xi1>, vector<4x128xf32>
    %112 = arith.maximumf %105, %111 : vector<4x128xf32>
    %113 = vector.extract_strided_slice %0 {offsets = [6, 0, 0], sizes = [1, 4, 128], strides = [1, 1, 1]} : vector<9x4x128xf32> to vector<1x4x128xf32>
    %114 = vector.shape_cast %113 : vector<1x4x128xf32> to vector<4x128xf32>
    %115 = arith.ori %65, %69 : vector<1x128xi1>
    %cst_24 = arith.constant -1.000000e+30 : f32
    %116 = vector.shape_cast %115 : vector<1x128xi1> to vector<1x128xi1>
    %117 = vector.broadcast %116 : vector<1x128xi1> to vector<4x128xi1>
    %118 = vector.broadcast %cst_24 : f32 to vector<4x128xf32>
    %119 = arith.select %117, %118, %114 : vector<4x128xi1>, vector<4x128xf32>
    %120 = arith.maximumf %112, %119 : vector<4x128xf32>
    %121 = vector.extract_strided_slice %0 {offsets = [7, 0, 0], sizes = [1, 4, 128], strides = [1, 1, 1]} : vector<9x4x128xf32> to vector<1x4x128xf32>
    %122 = vector.shape_cast %121 : vector<1x4x128xf32> to vector<4x128xf32>
    %cst_25 = arith.constant -1.000000e+30 : f32
    %123 = vector.shape_cast %65 : vector<1x128xi1> to vector<1x128xi1>
    %124 = vector.broadcast %123 : vector<1x128xi1> to vector<4x128xi1>
    %125 = vector.broadcast %cst_25 : f32 to vector<4x128xf32>
    %126 = arith.select %124, %125, %122 : vector<4x128xi1>, vector<4x128xf32>
    %127 = arith.maximumf %120, %126 : vector<4x128xf32>
    %128 = vector.extract_strided_slice %0 {offsets = [8, 0, 0], sizes = [1, 4, 128], strides = [1, 1, 1]} : vector<9x4x128xf32> to vector<1x4x128xf32>
    %129 = vector.shape_cast %128 : vector<1x4x128xf32> to vector<4x128xf32>
    %130 = arith.ori %65, %73 : vector<1x128xi1>
    %cst_26 = arith.constant -1.000000e+30 : f32
    %131 = vector.shape_cast %130 : vector<1x128xi1> to vector<1x128xi1>
    %132 = vector.broadcast %131 : vector<1x128xi1> to vector<4x128xi1>
    %133 = vector.broadcast %cst_26 : f32 to vector<4x128xf32>
    %134 = arith.select %132, %133, %129 : vector<4x128xi1>, vector<4x128xf32>
    %135 = arith.maximumf %127, %134 : vector<4x128xf32>
    %c0_27 = arith.constant 0 : index
    %c0_28 = arith.constant 0 : index
    %136 = vector.load %arg3[%c0_27, %c0_28] : memref<16x2xf32, #tpu.memory_space<vmem>>, vector<16x2xf32>
    %137 = vector.extract_strided_slice %136 {offsets = [0, 0], sizes = [16, 1], strides = [1, 1]} : vector<16x2xf32> to vector<16x1xf32>
    %138 = vector.extract_strided_slice %136 {offsets = [0, 1], sizes = [16, 1], strides = [1, 1]} : vector<16x2xf32> to vector<16x1xf32>
    %139 = vector.extract_strided_slice %138 {offsets = [0, 0], sizes = [12, 1], strides = [1, 1]} : vector<16x1xf32> to vector<12x1xf32>
    %140 = vector.broadcast %139 : vector<12x1xf32> to vector<12x128xf32>
    %141 = arith.addf %56, %140 : vector<12x128xf32>
    %142 = vector.extract_strided_slice %137 {offsets = [12, 0], sizes = [4, 1], strides = [1, 1]} : vector<16x1xf32> to vector<4x1xf32>
    %143 = vector.broadcast %142 : vector<4x1xf32> to vector<4x128xf32>
    %144 = arith.mulf %135, %143 : vector<4x128xf32>
    %145 = vector.extract_strided_slice %138 {offsets = [12, 0], sizes = [4, 1], strides = [1, 1]} : vector<16x1xf32> to vector<4x1xf32>
    %146 = vector.broadcast %145 : vector<4x1xf32> to vector<4x128xf32>
    %147 = arith.addf %144, %146 : vector<4x128xf32>
    %cst_29 = arith.constant 0.000000e+00 : f32
    %148 = vector.broadcast %cst_29 : f32 to vector<12x128xf32>
    %149 = arith.maximumf %141, %148 : vector<12x128xf32>
    %c0_30 = arith.constant 0 : index
    %c0_31 = arith.constant 0 : index
    %150 = vector.load %arg5[%c0_30, %c0_31] : memref<16x128xf32, #tpu.memory_space<vmem>>, vector<12x128xf32>
    tpu.vector_store %arg5[%c0_30, %c0_31], %149 {strides = array<i32>} : memref<16x128xf32, #tpu.memory_space<vmem>>, vector<12x128xf32>,
    %cst_32 = arith.constant 0.000000e+00 : f32
    %151 = vector.broadcast %cst_32 : f32 to vector<4x128xf32>
    %152 = arith.maximumf %147, %151 : vector<4x128xf32>
    %c12 = arith.constant 12 : index
    %c0_33 = arith.constant 0 : index
    %153 = vector.load %arg5[%c12, %c0_33] : memref<16x128xf32, #tpu.memory_space<vmem>>, vector<4x128xf32>
    tpu.vector_store %arg5[%c12, %c0_33], %152 {strides = array<i32>} : memref<16x128xf32, #tpu.memory_space<vmem>>, vector<4x128xf32>,
    return
  }
  func.func @transform_0(%arg0: i32) -> (i32, i32, i32) {
    %c0_i32 = arith.constant 0 : i32
    %c0_i32_0 = arith.constant 0 : i32
    %c0_i32_1 = arith.constant 0 : i32
    return %c0_i32, %c0_i32_0, %arg0 : i32, i32, i32
  }
  func.func @transform_1(%arg0: i32) -> (i32, i32, i32) {
    %c0_i32 = arith.constant 0 : i32
    %c0_i32_0 = arith.constant 0 : i32
    %c0_i32_1 = arith.constant 0 : i32
    %c0_i32_2 = arith.constant 0 : i32
    return %c0_i32, %c0_i32_0, %c0_i32_1 : i32, i32, i32
  }
  func.func @transform_2(%arg0: i32) -> (i32, i32) {
    %c0_i32 = arith.constant 0 : i32
    %c0_i32_0 = arith.constant 0 : i32
    %c0_i32_1 = arith.constant 0 : i32
    return %c0_i32, %c0_i32_0 : i32, i32
  }
  func.func @transform_3(%arg0: i32) -> (i32, i32) {
    %c0_i32 = arith.constant 0 : i32
    %c0_i32_0 = arith.constant 0 : i32
    return %c0_i32, %arg0 : i32, i32
  }
  func.func @transform_4(%arg0: i32) -> (i32, i32) {
    %c0_i32 = arith.constant 0 : i32
    %c0_i32_0 = arith.constant 0 : i32
    return %c0_i32, %arg0 : i32, i32
  }
}

</mosaic_0001>

<llo_original>
// kernel: tpu_custom_call.1
$region0: #{tpu_custom_call.1}
  #allocation0 [shape = 'u32[]', space=smem, size = 0x4, offset = 0x4, fixed_abs, tag = 'smem constant byte address 0x4 - core index']
  #allocation1 [shape = 'u32[72,128]{1,0:T(1,128)}', space=vmem, size = 0x9000, scoped, tag = 'internal scratch']
  %s0 = inlined_call_operand.vmem [shape: f32[9,4,128], index: 0, kind: input, shape index: {}]
  %s1 = inlined_call_operand.vmem [shape: f32[9,12,4], index: 1, kind: input, shape index: {}]
  %s2 = inlined_call_operand.vmem [shape: f32[16,2], index: 2, kind: input, shape index: {}]
  %s3 = inlined_call_operand.vmem [shape: s32[1,128], index: 3, kind: input, shape index: {}]
  %s4 = inlined_call_operand.hbm [shape: f32[16,128], index: 4, kind: output, shape index: {}]
  %s5 = sld [smem:[#allocation0]]
  $region26: #{tpu_custom_call.1} parent=0
    _
  %s7 = ssub.s32 1, %s5
  %s8 = scalar_select 0, %s7, %s5
  $region1: #{tpu_custom_call.1} parent=0
    #allocation2 [shape = 'u8[8192]{0}', space=vmem, size = 0x2000, scoped, tag = 'output window, operand 0, single buffered']
    #allocation3 [shape = 's32[1]{0}', space=sflag, size = 0x4, scoped, tag = 'scoped memory for tpu_custom_call.1']
    %9 = vsyncpa [#allocation3], 0
    // Predicated region
    $region2: #{tpu_custom_call.1} parent=1 // pred_check
      _
    $region3: #{tpu_custom_call.1} parent=1 // pred_check_branch
      %11 = sbr.rel (0) target = $region5
    $region4: #{tpu_custom_call.1} parent=1 // pred_region
      _
    $region5: #{tpu_custom_call.1} parent=1 // pred_fallthru
      _
    // Predicated region
    $region6: #{tpu_custom_call.1} parent=1 // pred_check
      _
    $region7: #{tpu_custom_call.1} parent=1 // pred_check_branch
      %13 = sbr.rel (0) target = $region9
    $region8: #{tpu_custom_call.1} parent=1 // pred_region
      _
    $region9: #{tpu_custom_call.1} parent=1 // pred_fallthru
      _
    // Predicated region
    $region10: #{tpu_custom_call.1} parent=1 // pred_check
      _
    $region11: #{tpu_custom_call.1} parent=1 // pred_check_branch
      %15 = sbr.rel (0) target = $region13
    $region12: #{tpu_custom_call.1} parent=1 // pred_region
      _
    $region13: #{tpu_custom_call.1} parent=1 // pred_fallthru
      _
    // Predicated region
    $region14: #{tpu_custom_call.1} parent=1 // pred_check
      _
    $region15: #{tpu_custom_call.1} parent=1 // pred_check_branch
      %17 = sbr.rel (0) target = $region17
    $region16: #{tpu_custom_call.1} parent=1 // pred_region
      _
    $region17: #{tpu_custom_call.1} parent=1 // pred_fallthru
      _
    %v18 = vld [vmem:[%s0] sm:$0xf]
    %v19 = vld [vmem:[%s0 + $0x4] sm:$0xf]
    %v20 = vld [vmem:[%s0 + $0x8] sm:$0xf]
    %v21 = vld [vmem:[%s0 + $0xc] sm:$0xf]
    %v22 = vld [vmem:[%s0 + $0x10] sm:$0xf]
    %v23 = vld [vmem:[%s0 + $0x14] sm:$0xf]
    %v24 = vld [vmem:[%s0 + $0x18] sm:$0xf]
    %v25 = vld [vmem:[%s0 + $0x1c] sm:$0xf]
    %v26 = vld [vmem:[%s0 + $0x20] sm:$0xf]
    %v27 = vld [vmem:[%s1] sm:$0xff]
    %v28 = vld [vmem:[%s1 + $0x8] sm:$0xf]
    %v29 = vld [vmem:[%s1 + $0x10] sm:$0xff]
    %v30 = vld [vmem:[%s1 + $0x18] sm:$0xf]
    %v31 = vld [vmem:[%s1 + $0x20] sm:$0xff]
    %v32 = vld [vmem:[%s1 + $0x28] sm:$0xf]
    %v33 = vld [vmem:[%s1 + $0x30] sm:$0xff]
    %v34 = vld [vmem:[%s1 + $0x38] sm:$0xf]
    %v35 = vld [vmem:[%s1 + $0x40] sm:$0xff]
    %v36 = vld [vmem:[%s1 + $0x48] sm:$0xf]
    %v37 = vld [vmem:[%s1 + $0x50] sm:$0xff]
    %v38 = vld [vmem:[%s1 + $0x58] sm:$0xf]
    %v39 = vld [vmem:[%s1 + $0x60] sm:$0xff]
    %v40 = vld [vmem:[%s1 + $0x68] sm:$0xf]
    %v41 = vld [vmem:[%s1 + $0x70] sm:$0xff]
    %v42 = vld [vmem:[%s1 + $0x78] sm:$0xf]
    %v43 = vld [vmem:[%s1 + $0x80] sm:$0xff]
    %v44 = vld [vmem:[%s1 + $0x88] sm:$0xf]
    %vm45 = vcmask 31744
    %v47 = vsel %vm45, %v29, 0
    %v50 = vsel %vm45, %v30, 0
    %vm52 = vcmask 1043456
    %v54 = vsel %vm52, %v19, 0
    %56 = vmatpush.msra.mxu0 0.0
    %57 = vmatpush.msra.mxu0 0.0
    %58 = vmatpush.msra.mxu0 0.0
    %59 = vmatpush.msra.mxu0 0.0
    %60 = vmatpush.msra.mxu0 0.0
    %61 = vmatpush.msra.mxu0 0.0
    %62 = vmatpush.msra.mxu0 0.0
    %63 = vmatpush.msra.mxu0 0.0
    %64 = vmatpush.msra.mxu0 0.0
    %65 = vmatpush.msra.mxu0 0.0
    %66 = vmatpush.msra.mxu0 0.0
    %67 = vmatpush.msra.mxu0 0.0
    %68 = vmatpush.msra.mxu0 0.0
    %69 = vmatpush.msra.mxu0 0.0
    %70 = vmatpush.msra.mxu0 0.0
    %71 = vmatpush.msra.mxu0 %v54
    %72 = vmatmul.f32.gmra.mxu0 %v47
    %v73 = vpop.f32.mrf.mxu0
    %v74 = vadd.f32 0.0, %v73
    %75 = vmatmul.f32.gmra.mxu0 %v50
    %v76 = vpop.f32.mrf.mxu0
    %v77 = vadd.f32 0.0, %v76
    %78 = vdwg.mxu0
    %v80 = vsel %vm45, %v27, 0
    %v83 = vsel %vm45, %v28, 0
    %v86 = vsel %vm52, %v18, 0
    %88 = vmatpush.msra.mxu0 0.0
    %89 = vmatpush.msra.mxu0 0.0
    %90 = vmatpush.msra.mxu0 0.0
    %91 = vmatpush.msra.mxu0 0.0
    %92 = vmatpush.msra.mxu0 0.0
    %93 = vmatpush.msra.mxu0 0.0
    %94 = vmatpush.msra.mxu0 0.0
    %95 = vmatpush.msra.mxu0 0.0
    %96 = vmatpush.msra.mxu0 0.0
    %97 = vmatpush.msra.mxu0 0.0
    %98 = vmatpush.msra.mxu0 0.0
    %99 = vmatpush.msra.mxu0 0.0
    %100 = vmatpush.msra.mxu0 0.0
    %101 = vmatpush.msra.mxu0 0.0
    %102 = vmatpush.msra.mxu0 0.0
    %103 = vmatpush.msra.mxu0 %v86
    %104 = vmatmul.f32.gmra.mxu0 %v80
    %v105 = vpop.f32.mrf.mxu0
    %v106 = vadd.f32 %v74, %v105
    %107 = vmatmul.f32.gmra.mxu0 %v83
    %v108 = vpop.f32.mrf.mxu0
    %v109 = vadd.f32 %v77, %v108
    %110 = vdwg.mxu0
    %v112 = vsel %vm45, %v31, 0
    %v115 = vsel %vm45, %v32, 0
    %v118 = vsel %vm52, %v20, 0
    %120 = vmatpush.msra.mxu0 0.0
    %121 = vmatpush.msra.mxu0 0.0
    %122 = vmatpush.msra.mxu0 0.0
    %123 = vmatpush.msra.mxu0 0.0
    %124 = vmatpush.msra.mxu0 0.0
    %125 = vmatpush.msra.mxu0 0.0
    %126 = vmatpush.msra.mxu0 0.0
    %127 = vmatpush.msra.mxu0 0.0
    %128 = vmatpush.msra.mxu0 0.0
    %129 = vmatpush.msra.mxu0 0.0
    %130 = vmatpush.msra.mxu0 0.0
    %131 = vmatpush.msra.mxu0 0.0
    %132 = vmatpush.msra.mxu0 0.0
    %133 = vmatpush.msra.mxu0 0.0
    %134 = vmatpush.msra.mxu0 0.0
    %135 = vmatpush.msra.mxu0 %v118
    %136 = vmatmul.f32.gmra.mxu0 %v112
    %v137 = vpop.f32.mrf.mxu0
    %v138 = vadd.f32 0.0, %v137
    %139 = vmatmul.f32.gmra.mxu0 %v115
    %v140 = vpop.f32.mrf.mxu0
    %v141 = vadd.f32 0.0, %v140
    %142 = vdwg.mxu0
    %v143 = vadd.f32 %v106, %v138
    %v144 = vadd.f32 %v109, %v141
    %v146 = vsel %vm45, %v33, 0
    %v149 = vsel %vm45, %v34, 0
    %v152 = vsel %vm52, %v21, 0
    %154 = vmatpush.msra.mxu0 0.0
    %155 = vmatpush.msra.mxu0 0.0
    %156 = vmatpush.msra.mxu0 0.0
    %157 = vmatpush.msra.mxu0 0.0
    %158 = vmatpush.msra.mxu0 0.0
    %159 = vmatpush.msra.mxu0 0.0
    %160 = vmatpush.msra.mxu0 0.0
    %161 = vmatpush.msra.mxu0 0.0
    %162 = vmatpush.msra.mxu0 0.0
    %163 = vmatpush.msra.mxu0 0.0
    %164 = vmatpush.msra.mxu0 0.0
    %165 = vmatpush.msra.mxu0 0.0
    %166 = vmatpush.msra.mxu0 0.0
    %167 = vmatpush.msra.mxu0 0.0
    %168 = vmatpush.msra.mxu0 0.0
    %169 = vmatpush.msra.mxu0 %v152
    %170 = vmatmul.f32.gmra.mxu0 %v146
    %v171 = vpop.f32.mrf.mxu0
    %v172 = vadd.f32 0.0, %v171
    %173 = vmatmul.f32.gmra.mxu0 %v149
    %v174 = vpop.f32.mrf.mxu0
    %v175 = vadd.f32 0.0, %v174
    %176 = vdwg.mxu0
    %v177 = vadd.f32 %v143, %v172
    %v178 = vadd.f32 %v144, %v175
    %v180 = vsel %vm45, %v35, 0
    %v183 = vsel %vm45, %v36, 0
    %v186 = vsel %vm52, %v22, 0
    %188 = vmatpush.msra.mxu0 0.0
    %189 = vmatpush.msra.mxu0 0.0
    %190 = vmatpush.msra.mxu0 0.0
    %191 = vmatpush.msra.mxu0 0.0
    %192 = vmatpush.msra.mxu0 0.0
    %193 = vmatpush.msra.mxu0 0.0
    %194 = vmatpush.msra.mxu0 0.0
    %195 = vmatpush.msra.mxu0 0.0
    %196 = vmatpush.msra.mxu0 0.0
    %197 = vmatpush.msra.mxu0 0.0
    %198 = vmatpush.msra.mxu0 0.0
    %199 = vmatpush.msra.mxu0 0.0
    %200 = vmatpush.msra.mxu0 0.0
    %201 = vmatpush.msra.mxu0 0.0
    %202 = vmatpush.msra.mxu0 0.0
    %203 = vmatpush.msra.mxu0 %v186
    %204 = vmatmul.f32.gmra.mxu0 %v180
    %v205 = vpop.f32.mrf.mxu0
    %v206 = vadd.f32 0.0, %v205
    %207 = vmatmul.f32.gmra.mxu0 %v183
    %v208 = vpop.f32.mrf.mxu0
    %v209 = vadd.f32 0.0, %v208
    %210 = vdwg.mxu0
    %v211 = vadd.f32 %v177, %v206
    %v212 = vadd.f32 %v178, %v209
    %v214 = vsel %vm45, %v37, 0
    %v217 = vsel %vm45, %v38, 0
    %v220 = vsel %vm52, %v23, 0
    %222 = vmatpush.msra.mxu0 0.0
    %223 = vmatpush.msra.mxu0 0.0
    %224 = vmatpush.msra.mxu0 0.0
    %225 = vmatpush.msra.mxu0 0.0
    %226 = vmatpush.msra.mxu0 0.0
    %227 = vmatpush.msra.mxu0 0.0
    %228 = vmatpush.msra.mxu0 0.0
    %229 = vmatpush.msra.mxu0 0.0
    %230 = vmatpush.msra.mxu0 0.0
    %231 = vmatpush.msra.mxu0 0.0
    %232 = vmatpush.msra.mxu0 0.0
    %233 = vmatpush.msra.mxu0 0.0
    %234 = vmatpush.msra.mxu0 0.0
    %235 = vmatpush.msra.mxu0 0.0
    %236 = vmatpush.msra.mxu0 0.0
    %237 = vmatpush.msra.mxu0 %v220
    %238 = vmatmul.f32.gmra.mxu0 %v214
    %v239 = vpop.f32.mrf.mxu0
    %v240 = vadd.f32 0.0, %v239
    %241 = vmatmul.f32.gmra.mxu0 %v217
    %v242 = vpop.f32.mrf.mxu0
    %v243 = vadd.f32 0.0, %v242
    %244 = vdwg.mxu0
    %v245 = vadd.f32 %v211, %v240
    %v246 = vadd.f32 %v212, %v243
    %v248 = vsel %vm45, %v39, 0
    %v251 = vsel %vm45, %v40, 0
    %v254 = vsel %vm52, %v24, 0
    %256 = vmatpush.msra.mxu0 0.0
    %257 = vmatpush.msra.mxu0 0.0
    %258 = vmatpush.msra.mxu0 0.0
    %259 = vmatpush.msra.mxu0 0.0
    %260 = vmatpush.msra.mxu0 0.0
    %261 = vmatpush.msra.mxu0 0.0
    %262 = vmatpush.msra.mxu0 0.0
    %263 = vmatpush.msra.mxu0 0.0
    %264 = vmatpush.msra.mxu0 0.0
    %265 = vmatpush.msra.mxu0 0.0
    %266 = vmatpush.msra.mxu0 0.0
    %267 = vmatpush.msra.mxu0 0.0
    %268 = vmatpush.msra.mxu0 0.0
    %269 = vmatpush.msra.mxu0 0.0
    %270 = vmatpush.msra.mxu0 0.0
    %271 = vmatpush.msra.mxu0 %v254
    %272 = vmatmul.f32.gmra.mxu0 %v248
    %v273 = vpop.f32.mrf.mxu0
    %v274 = vadd.f32 0.0, %v273
    %275 = vmatmul.f32.gmra.mxu0 %v251
    %v276 = vpop.f32.mrf.mxu0
    %v277 = vadd.f32 0.0, %v276
    %278 = vdwg.mxu0
    %v279 = vadd.f32 %v245, %v274
    %v280 = vadd.f32 %v246, %v277
    %v282 = vsel %vm45, %v41, 0
    %v285 = vsel %vm45, %v42, 0
    %v288 = vsel %vm52, %v25, 0
    %290 = vmatpush.msra.mxu0 0.0
    %291 = vmatpush.msra.mxu0 0.0
    %292 = vmatpush.msra.mxu0 0.0
    %293 = vmatpush.msra.mxu0 0.0
    %294 = vmatpush.msra.mxu0 0.0
    %295 = vmatpush.msra.mxu0 0.0
    %296 = vmatpush.msra.mxu0 0.0
    %297 = vmatpush.msra.mxu0 0.0
    %298 = vmatpush.msra.mxu0 0.0
    %299 = vmatpush.msra.mxu0 0.0
    %300 = vmatpush.msra.mxu0 0.0
    %301 = vmatpush.msra.mxu0 0.0
    %302 = vmatpush.msra.mxu0 0.0
    %303 = vmatpush.msra.mxu0 0.0
    %304 = vmatpush.msra.mxu0 0.0
    %305 = vmatpush.msra.mxu0 %v288
    %306 = vmatmul.f32.gmra.mxu0 %v282
    %v307 = vpop.f32.mrf.mxu0
    %v308 = vadd.f32 0.0, %v307
    %309 = vmatmul.f32.gmra.mxu0 %v285
    %v310 = vpop.f32.mrf.mxu0
    %v311 = vadd.f32 0.0, %v310
    %312 = vdwg.mxu0
    %v313 = vadd.f32 %v279, %v308
    %v314 = vadd.f32 %v280, %v311
    %v316 = vsel %vm45, %v43, 0
    %v319 = vsel %vm45, %v44, 0
    %v322 = vsel %vm52, %v26, 0
    %324 = vmatpush.msra.mxu0 0.0
    %325 = vmatpush.msra.mxu0 0.0
    %326 = vmatpush.msra.mxu0 0.0
    %327 = vmatpush.msra.mxu0 0.0
    %328 = vmatpush.msra.mxu0 0.0
    %329 = vmatpush.msra.mxu0 0.0
    %330 = vmatpush.msra.mxu0 0.0
    %331 = vmatpush.msra.mxu0 0.0
    %332 = vmatpush.msra.mxu0 0.0
    %333 = vmatpush.msra.mxu0 0.0
    %334 = vmatpush.msra.mxu0 0.0
    %335 = vmatpush.msra.mxu0 0.0
    %336 = vmatpush.msra.mxu0 0.0
    %337 = vmatpush.msra.mxu0 0.0
    %338 = vmatpush.msra.mxu0 0.0
    %339 = vmatpush.msra.mxu0 %v322
    %340 = vmatmul.f32.gmra.mxu0 %v316
    %v341 = vpop.f32.mrf.mxu0
    %v342 = vadd.f32 0.0, %v341
    %343 = vmatmul.f32.gmra.mxu0 %v319
    %v344 = vpop.f32.mrf.mxu0
    %v345 = vadd.f32 0.0, %v344
    %346 = vdwg.mxu0
    %v347 = vadd.f32 %v313, %v342
    %v348 = vadd.f32 %v314, %v345
    %v349 = vld [vmem:[%s3] sm:$0x1]
    %v350 = vand.u32 %v349, 1
    %vm351 = vcmp.ne.s32.totalorder %v350, 0
    %v352 = vand.u32 %v349, 2
    %vm353 = vcmp.ne.s32.totalorder %v352, 0
    %v354 = vand.u32 %v349, 4
    %vm355 = vcmp.ne.s32.totalorder %v354, 0
    %v356 = vand.u32 %v349, 8
    %vm357 = vcmp.ne.s32.totalorder %v356, 0
    %vm358 = vmor %vm351, %vm355
    %v359 = vsel %vm358, 1, 0
    %v360 = vperm.slane %v359, 0
    %vm361 = vcmp.eq.s32.totalorder %v360, 1
    %v362 = vsel %vm361, -1e+30, %v18
    %v363 = vsel %vm351, 1, 0
    %v364 = vperm.slane %v363, 0
    %vm365 = vcmp.eq.s32.totalorder %v364, 1
    %v366 = vsel %vm365, -1e+30, %v19
    %v367 = vmax.f32 %v362, %v366
    %vm368 = vmor %vm351, %vm357
    %v369 = vsel %vm368, 1, 0
    %v370 = vperm.slane %v369, 0
    %vm371 = vcmp.eq.s32.totalorder %v370, 1
    %v372 = vsel %vm371, -1e+30, %v20
    %v373 = vmax.f32 %v367, %v372
    %v374 = vsel %vm355, 1, 0
    %v375 = vperm.slane %v374, 0
    %vm376 = vcmp.eq.s32.totalorder %v375, 1
    %v377 = vsel %vm376, -1e+30, %v21
    %v378 = vmax.f32 %v373, %v377
    %v379 = vmax.f32 %v378, %v22
    %v380 = vsel %vm357, 1, 0
    %v381 = vperm.slane %v380, 0
    %vm382 = vcmp.eq.s32.totalorder %v381, 1
    %v383 = vsel %vm382, -1e+30, %v23
    %v384 = vmax.f32 %v379, %v383
    %vm385 = vmor %vm353, %vm355
    %v386 = vsel %vm385, 1, 0
    %v387 = vperm.slane %v386, 0
    %vm388 = vcmp.eq.s32.totalorder %v387, 1
    %v389 = vsel %vm388, -1e+30, %v24
    %v390 = vmax.f32 %v384, %v389
    %v391 = vsel %vm353, 1, 0
    %v392 = vperm.slane %v391, 0
    %vm393 = vcmp.eq.s32.totalorder %v392, 1
    %v394 = vsel %vm393, -1e+30, %v25
    %v395 = vmax.f32 %v390, %v394
    %vm396 = vmor %vm353, %vm357
    %v397 = vsel %vm396, 1, 0
    %v398 = vperm.slane %v397, 0
    %vm399 = vcmp.eq.s32.totalorder %v398, 1
    %v400 = vsel %vm399, -1e+30, %v26
    %v401 = vmax.f32 %v395, %v400
    %v402 = vld [vmem:[%s2] sm:$0xff]
    %v403 = vld [vmem:[%s2 + $0x8] sm:$0xff]
    %405 = vset.pattern.permute.xlu0 1
    %406 = vperm.xlu0 %405, %v402
    %v407 = vpop.permute.xlu0 %406
    %410 = vset.pattern.permute.xlu0 1
    %411 = vperm.xlu0 %410, %v403
    %v412 = vpop.permute.xlu0 %411
    %v414 = vadd.f32 %v347, %v407
    %v415 = vadd.f32 %v348, %v412
    %416 = vset.pattern.permute.xlu0 0
    %417 = vperm.xlu0 %416, %v403
    %v418 = vpop.permute.xlu0 %417
    %v419 = vrot.slane %v418, 4
    %v421 = vmul.f32 %v401, %v419
    %v422 = vrot.slane %v412, 4
    %v424 = vadd.f32 %v421, %v422
    %v425 = vmax.f32 %v414, 0.0
    %v426 = vmax.f32 %v415, 0.0
    %427 = vst [vmem:[#allocation2] sm:$0xff] %v425
    %428 = vst [vmem:[#allocation2 + $0x8] sm:$0xf] %v426
    %v429 = vmax.f32 %v424, 0.0
    %430 = vst [vmem:[#allocation2 + $0xc] sm:$0xf] %v429
    // Predicated region
    $region18: #{tpu_custom_call.1} parent=1 // pred_check
      _
    $region19: #{tpu_custom_call.1} parent=1 // pred_check_branch
      %432 = sbr.rel (0) target = $region21
    $region20: #{tpu_custom_call.1} parent=1 // pred_region
      %434 = vsyncadd [#allocation3], 0
      %s435 = sshll.u32 [#allocation2], 4
      %s436 = int_to_ptr.vmem [resolvable:$true] %s435
      %s437 = sshll.u32 %s4, 4
      %s438 = int_to_ptr.hbm [resolvable:$true] %s437
      %443 = dma.vmem_to_hbm [thread:$0]  %s436, 256, %s438, [#allocation3], 128, 128, 8
    $region21: #{tpu_custom_call.1} parent=1 // pred_fallthru
      _
    // Predicated region
    $region22: #{tpu_custom_call.1} parent=1 // pred_check
      _
    $region23: #{tpu_custom_call.1} parent=1 // pred_check_branch
      %445 = sbr.rel (0) target = $region25
    $region24: #{tpu_custom_call.1} parent=1 // pred_region
      %447 = dma.done [#allocation3], 256
    $region25: #{tpu_custom_call.1} parent=1 // pred_fallthru
      _
    %448 = vsyncpa [#allocation3], 1

</llo_original>
